<compile_context>
chip_gen: v7x
topology: tpu7x:2x2x1
jax: 0.10.0
libtpu: 0.0.40
codegen_flags: <defaults>
</compile_context>

<pallas_src>
import jax
import jax.numpy as jnp
import numpy as np
from jax.experimental import pallas as pl
from jax.experimental.pallas import tpu as pltpu


_LANES = 128
_SUBLANE_ALIGN = 16            # valid for f32 and 16-bit dtypes
_MAX_BLOCK_ROWS = 2048         # diminishing returns past ~1024 rows per tile

_VMEM_LIMIT_CACHE = None
_NUM_CORES_CACHE = None


def _round_up(x: int, m: int) -> int:
    return ((x + m - 1) // m) * m


def _vmem_limit_bytes() -> int:
    """Generation-aware scoped-VMEM limit (≈75% of per-core VMEM, capped)."""
    global _VMEM_LIMIT_CACHE
    if _VMEM_LIMIT_CACHE is None:
        try:
            cap = int(pltpu.get_tpu_info().vmem_capacity_bytes)
        except Exception:
            cap = 64 * 1024 * 1024          # conservative (v7x-safe) fallback
        _VMEM_LIMIT_CACHE = min((cap * 3) // 4, 112 * 1024 * 1024)
    return _VMEM_LIMIT_CACHE


def _num_tensorcores() -> int:
    """Best-effort TensorCore count; 2 is a harmless default (serial loop on 1-TC chips)."""
    global _NUM_CORES_CACHE
    if _NUM_CORES_CACHE is None:
        n = 0
        try:
            info = pltpu.get_tpu_info()
            for attr in ("num_cores", "num_tensor_cores", "num_tensorcores",
                         "tensorcore_count", "core_count"):
                v = getattr(info, attr, None)
                if isinstance(v, int) and v > 0:
                    n = v
                    break
        except Exception:
            pass
        _NUM_CORES_CACHE = n if n in (1, 2) else 2
    return _NUM_CORES_CACHE


def _make_loss_kernel(norm: int, ignore_index: float, *, rows_needed: int,
                      S: int, steps_per_core: int, B: int, C: int,
                      acc_rows: int):
    """Kernel over (B, C, S, 128) tiles; accumulates into (acc_rows, 128) partials."""
    groups = (B * S) // acc_rows

    def kernel(pred_ref, targ_ref, num_ref, cnt_ref):
        # One resident accumulator per "core chunk"; init on its first step.
        @pl.when(pl.program_id(1) == 0)
        def _():
            num_ref[...] = jnp.zeros_like(num_ref)
            cnt_ref[...] = jnp.zeros_like(cnt_ref)

        # Positional validity of each row of this (possibly ragged or
        # clamped-duplicate) block: logical block index is UNclamped, so
        # blocks past the end of the data contribute exactly nothing.
        blk = pl.program_id(0) * steps_per_core + pl.program_id(1)
        row0 = blk * S
        row_ids = row0 + jax.lax.broadcasted_iota(jnp.int32, (S, _LANES), 0)
        row_valid = row_ids < rows_needed                       # [S, 128]

        # Value mask from target channel 0, compared in the native dtype.
        t0 = targ_ref[:, 0]                                      # [B, S, 128]
        mask = jnp.logical_and(t0 != jnp.asarray(ignore_index, t0.dtype),
                               row_valid)                        # [B, S, 128]

        # Channel reduction (dim=-3 in NCHW) as a running f32 accumulation:
        # keeps the live f32 working set at ~1/C of the (B, C, S, 128) tile.
        loss_c = jnp.zeros((B, S, _LANES), jnp.float32)
        for ci in range(C):
            d = (pred_ref[:, ci].astype(jnp.float32)
                 - targ_ref[:, ci].astype(jnp.float32))
            loss_c = loss_c + (jnp.abs(d) if norm == 1 else d * d)

        # Select (not multiply) so garbage in ragged regions cannot leak.
        masked = jnp.where(mask, loss_c, 0.0)
        cnt = mask.astype(jnp.float32)

        # Fold onto an (acc_rows, 128) footprint: acc_rows//8 independent VPU
        # add chains; the final cross-lane reduce happens once in the wrapper.
        num_ref[0] += masked.reshape(groups, acc_rows, _LANES).sum(axis=0)
        cnt_ref[0] += cnt.reshape(groups, acc_rows, _LANES).sum(axis=0)

    return kernel


def spatial_regression_loss(prediction, target, *, norm=2, ignore_index=255,
                            block_rows=None):
    """Pallas equivalent of SpatialRegressionLoss.forward.

    `block_rows` is an optional testing hook capping the number of 128-lane
    rows per block (default: derived from the VMEM budget).
    """
    assert prediction.ndim == 4, "Must be a 4D (NCHW) tensor"
    assert norm in (1, 2), f"Expected norm 1 or 2, but got norm={norm}"
    B, C, H, W = prediction.shape
    HW = H * W
    itemsize = jnp.dtype(prediction.dtype).itemsize
    rows_needed = pl.cdiv(HW, _LANES)

    # Lane alignment: no pad in the common HW % 128 == 0 case.  Otherwise pad
    # only the <=127 trailing elements per (b, c) row; the padded target lanes
    # get ignore_index so they drop out of both the sum and the count.
    pred_flat = prediction.reshape(B, C, HW)
    targ_flat = target.reshape(B, C, HW)
    lane_pad = rows_needed * _LANES - HW
    if lane_pad:
        pred_flat = jnp.pad(pred_flat, ((0, 0), (0, 0), (0, lane_pad)))
        targ_flat = jnp.pad(targ_flat, ((0, 0), (0, 0), (0, lane_pad)),
                            constant_values=float(ignore_index))
    pred4 = pred_flat.reshape(B, C, rows_needed, _LANES)
    targ4 = targ_flat.reshape(B, C, rows_needed, _LANES)

    # Tile sizing: biggest S (multiple of 16) such that 2 tensors x 2 pipeline
    # buffers PLUS the in-kernel f32 intermediates fit comfortably in VMEM.
    vmem_limit = _vmem_limit_bytes()
    in_bytes_per_row = 2 * 2 * B * C * _LANES * itemsize   # 2 inputs x double-buffer
    f32_bytes_per_row = 8 * B * _LANES * 4                 # f32 temporaries headroom
    s_budget = int(vmem_limit * 0.6) // (in_bytes_per_row + f32_bytes_per_row)
    s_budget = max(_SUBLANE_ALIGN, (s_budget // _SUBLANE_ALIGN) * _SUBLANE_ALIGN)
    s_budget = min(s_budget, _MAX_BLOCK_ROWS)
    if block_rows is not None:
        s_budget = min(s_budget, max(_SUBLANE_ALIGN,
                                     (block_rows // _SUBLANE_ALIGN) * _SUBLANE_ALIGN))

    # Core split: engage both TensorCores whenever there are >= 32 rows of work.
    ncores = _num_tensorcores() if rows_needed >= 2 * _SUBLANE_ALIGN else 1
    rows_per_core = pl.cdiv(rows_needed, ncores)
    S = min(_round_up(rows_per_core, _SUBLANE_ALIGN), s_budget)
    steps_per_core = pl.cdiv(rows_per_core, S)
    steps_total = pl.cdiv(rows_needed, S)      # number of blocks holding real rows
    last_block = steps_total - 1

    # Accumulator width: 32 rows (4 independent (8,128) add chains) when possible.
    acc_rows = 32 if (B * S) % 32 == 0 else _SUBLANE_ALIGN

    kernel = _make_loss_kernel(norm, float(ignore_index),
                               rows_needed=rows_needed, S=S,
                               steps_per_core=steps_per_core, B=B, C=C,
                               acc_rows=acc_rows)

    def in_map(c, i):
        blk = c * steps_per_core + i
        # Clamp blocks the core split pushed fully past the data back onto the
        # last real block (legal DMA); the in-kernel row mask zeroes them.
        return (0, 0, jnp.minimum(blk, last_block), 0)

    def out_map(c, i):
        return (c, 0, 0)

    cost = pl.CostEstimate(flops=(3 * C + 3) * B * HW, transcendentals=0,
                           bytes_accessed=2 * B * C * HW * itemsize)

    num, cnt = pl.pallas_call(
        kernel,
        out_shape=(
            jax.ShapeDtypeStruct((ncores, acc_rows, _LANES), jnp.float32),
            jax.ShapeDtypeStruct((ncores, acc_rows, _LANES), jnp.float32),
        ),
        grid_spec=pltpu.PrefetchScalarGridSpec(
            num_scalar_prefetch=0,
            grid=(ncores, steps_per_core),
            in_specs=[
                pl.BlockSpec((B, C, S, _LANES), in_map),
                pl.BlockSpec((B, C, S, _LANES), in_map),
            ],
            out_specs=(
                pl.BlockSpec((1, acc_rows, _LANES), out_map),
                pl.BlockSpec((1, acc_rows, _LANES), out_map),
            ),
        ),
        compiler_params=pltpu.CompilerParams(
            dimension_semantics=("parallel", "arbitrary"),
            vmem_limit_bytes=vmem_limit,
        ),
        cost_estimate=cost,
    )(pred4, targ4)

    num_s = jnp.sum(num)
    cnt_s = jnp.sum(cnt)
    # PyTorch returns 0.0 if the mask is empty; guard the divide.
    return jnp.where(cnt_s > 0, num_s / jnp.maximum(cnt_s, 1.0), 0.0).astype(
        jnp.float32
    )


def _reference_loss(prediction, target, *, norm=2, ignore_index=255):
    """Plain-JAX reference matching the PyTorch forward exactly (f32 math)."""
    prediction = prediction.astype(jnp.float32)
    target = target.astype(jnp.float32)
    mask = target[:, :1] != ignore_index
    diff = prediction - target
    loss = jnp.abs(diff) if norm == 1 else diff * diff
    loss = jnp.sum(loss, axis=1, keepdims=True)
    msum = jnp.sum(mask)
    return jnp.where(
        msum > 0,
        jnp.sum(jnp.where(mask, loss, 0.0)) / jnp.maximum(msum, 1).astype(jnp.float32),
        0.0,
    ).astype(jnp.float32)


if __name__ == "__main__":
    IGNORE = 255

    def make_inputs(key, shape, frac, dtype=jnp.float32):
        k1, k2, k3 = jax.random.split(key, 3)
        B, C, H, W = shape
        pred = jax.random.normal(k1, shape, dtype=jnp.float32)
        targ = jax.random.normal(k2, shape, dtype=jnp.float32)
        ign = jax.random.bernoulli(k3, frac, (B, 1, H, W))
        targ = targ.at[:, 0:1].set(jnp.where(ign, float(IGNORE), targ[:, 0:1]))
        return pred.astype(dtype), targ.astype(dtype)

    key = jax.random.PRNGKey(0)
    keys = jax.random.split(key, 8)
    checks = []

    def run(name, pred, targ, norm, tol, **kw):
        out = jax.block_until_ready(
            spatial_regression_loss(pred, targ, norm=norm, ignore_index=IGNORE, **kw))
        ref = jax.block_until_ready(
            _reference_loss(pred, targ, norm=norm, ignore_index=IGNORE))
        checks.append((name, out, ref, tol))

    # 1) Small aligned-lanes case (rows=2 -> single partial block), both norms.
    pred, targ = make_inputs(keys[0], (2, 4, 16, 16), 0.25)
    run("small-n1", pred, targ, 1, 1e-5)
    run("small-n2", pred, targ, 2, 1e-5)

    # 2) Unaligned spatial size (HW % 128 != 0 -> minimal lane-pad fallback).
    pred, targ = make_inputs(keys[1], (2, 3, 10, 10), 0.3)
    run("unaligned", pred, targ, 2, 1e-5)

    # 3) Multi-block, 2-core split, exactly divisible (forced small block_rows).
    pred, targ = make_inputs(keys[2], (2, 4, 64, 128), 0.25)
    run("multiblock", pred, targ, 2, 1e-5, block_rows=16)

    # 4) Ragged last block (50 rows, S=32 -> 18 valid rows in block 1), no pad.
    pred, targ = make_inputs(keys[3], (1, 2, 50, 128), 0.3)
    run("ragged", pred, targ, 1, 1e-5)

    # 5) Core split producing a fully out-of-range block (clamped + masked).
    pred, targ = make_inputs(keys[4], (1, 2, 80, 128), 0.25)
    run("clamped-oob", pred, targ, 2, 1e-5, block_rows=32)

    # 6) bf16 inputs, aligned (half the HBM traffic; kernel computes in f32).
    pred16, targ16 = make_inputs(keys[5], (2, 4, 64, 64), 0.25, dtype=jnp.bfloat16)
    run("bf16-aligned", pred16, targ16, 1, 1e-4)

    # 7) bf16 inputs with a ragged last block (20 of 32 rows valid).
    pred16, targ16 = make_inputs(keys[6], (1, 2, 40, 64), 0.3, dtype=jnp.bfloat16)
    run("bf16-ragged", pred16, targ16, 2, 1e-4)

    # 8) Fully-ignored target -> returns 0.0.
    pred, targ = make_inputs(keys[7], (1, 2, 8, 8), 1.0)
    run("all-ignored", pred, targ, 2, 1e-6)

    for name, out, ref, tol in checks:
        assert np.allclose(np.asarray(out), np.asarray(ref), rtol=tol, atol=tol), (
            f"{name}: kernel={out} ref={ref}"
        )

    print("KERNEL_OK")
</pallas_src>

<mosaic_0001>
module attributes {stable_mosaic.version = 11 : i64} {
  func.func @kernel(%arg0: i32, %arg1: i32, %arg2: memref<2x4x16x128xf32, #tpu.memory_space<vmem>>, %arg3: memref<2x4x16x128xf32, #tpu.memory_space<vmem>>, %arg4: memref<1x32x128xf32, #tpu.memory_space<vmem>>, %arg5: memref<1x32x128xf32, #tpu.memory_space<vmem>>) attributes {dimension_semantics = [#tpu.dimension_semantics<parallel>, #tpu.dimension_semantics<arbitrary>], iteration_bounds = array<i64: 1, 1>, scalar_prefetch = 0 : i64, scratch_operands = 0 : i64, tpu.core_type = #tpu.core_type<tc>, window_params = [{transform_indices = @transform_0, window_bounds = array<i64: 2, 4, 16, 128>}, {transform_indices = @transform_1, window_bounds = array<i64: 2, 4, 16, 128>}, {transform_indices = @transform_2, window_bounds = array<i64: 1, 32, 128>}, {transform_indices = @transform_3, window_bounds = array<i64: 1, 32, 128>}]} {
    %c0_i32 = arith.constant 0 : i32
    %0 = arith.cmpi eq, %arg1, %c0_i32 : i32
    %1 = arith.extui %0 : i1 to i32
    %c0_i32_0 = arith.constant 0 : i32
    %2 = arith.cmpi ne, %1, %c0_i32_0 : i32
    scf.if %2 {
      %cst_49 = arith.constant 0.000000e+00 : f32
      %67 = vector.broadcast %cst_49 : f32 to vector<1x32x128xf32>
      %c0_50 = arith.constant 0 : index
      %c0_51 = arith.constant 0 : index
      %c0_52 = arith.constant 0 : index
      %68 = vector.load %arg4[%c0_50, %c0_51, %c0_52] : memref<1x32x128xf32, #tpu.memory_space<vmem>>, vector<1x32x128xf32>
      tpu.vector_store %arg4[%c0_50, %c0_51, %c0_52], %67 {strides = array<i32>} : memref<1x32x128xf32, #tpu.memory_space<vmem>>, vector<1x32x128xf32>,
      %cst_53 = arith.constant 0.000000e+00 : f32
      %69 = vector.broadcast %cst_53 : f32 to vector<1x32x128xf32>
      %c0_54 = arith.constant 0 : index
      %c0_55 = arith.constant 0 : index
      %c0_56 = arith.constant 0 : index
      %70 = vector.load %arg5[%c0_54, %c0_55, %c0_56] : memref<1x32x128xf32, #tpu.memory_space<vmem>>, vector<1x32x128xf32>
      tpu.vector_store %arg5[%c0_54, %c0_55, %c0_56], %69 {strides = array<i32>} : memref<1x32x128xf32, #tpu.memory_space<vmem>>, vector<1x32x128xf32>,
    } else {
    }
    %c1_i32 = arith.constant 1 : i32
    %3 = arith.muli %arg0, %c1_i32 : i32
    %4 = arith.addi %3, %arg1 : i32
    %c16_i32 = arith.constant 16 : i32
    %5 = arith.muli %4, %c16_i32 : i32
    %6 = tpu.iota {dimensions = array<i32: 0>} : vector<16x128xi32>
    %7 = vector.broadcast %5 : i32 to vector<16x128xi32>
    %8 = arith.addi %7, %6 : vector<16x128xi32>
    %c2_i32 = arith.constant 2 : i32
    %9 = vector.broadcast %c2_i32 : i32 to vector<16x128xi32>
    %10 = arith.cmpi slt, %8, %9 : vector<16x128xi32>
    %c0 = arith.constant 0 : index
    %c0_1 = arith.constant 0 : index
    %c0_2 = arith.constant 0 : index
    %c0_3 = arith.constant 0 : index
    %11 = vector.load %arg3[%c0, %c0_1, %c0_2, %c0_3] : memref<2x4x16x128xf32, #tpu.memory_space<vmem>>, vector<2x1x16x128xf32>
    %12 = vector.shape_cast %11 : vector<2x1x16x128xf32> to vector<2x16x128xf32>
    %cst = arith.constant 2.550000e+02 : f32
    %13 = vector.broadcast %cst : f32 to vector<2x16x128xf32>
    %14 = arith.cmpf one, %12, %13 : vector<2x16x128xf32>
    %15 = vector.shape_cast %10 : vector<16x128xi1> to vector<1x16x128xi1>
    %16 = vector.broadcast %15 : vector<1x16x128xi1> to vector<2x16x128xi1>
    %17 = arith.andi %14, %16 : vector<2x16x128xi1>
    %cst_4 = arith.constant 0.000000e+00 : f32
    %18 = vector.broadcast %cst_4 : f32 to vector<2x16x128xf32>
    %c0_5 = arith.constant 0 : index
    %c0_6 = arith.constant 0 : index
    %c0_7 = arith.constant 0 : index
    %c0_8 = arith.constant 0 : index
    %19 = vector.load %arg2[%c0_5, %c0_6, %c0_7, %c0_8] : memref<2x4x16x128xf32, #tpu.memory_space<vmem>>, vector<2x1x16x128xf32>
    %20 = vector.shape_cast %19 : vector<2x1x16x128xf32> to vector<2x16x128xf32>
    %c0_9 = arith.constant 0 : index
    %c0_10 = arith.constant 0 : index
    %c0_11 = arith.constant 0 : index
    %c0_12 = arith.constant 0 : index
    %21 = vector.load %arg3[%c0_9, %c0_10, %c0_11, %c0_12] : memref<2x4x16x128xf32, #tpu.memory_space<vmem>>, vector<2x1x16x128xf32>
    %22 = vector.shape_cast %21 : vector<2x1x16x128xf32> to vector<2x16x128xf32>
    %23 = arith.subf %20, %22 : vector<2x16x128xf32>
    %24 = math.absf %23 : vector<2x16x128xf32>
    %25 = arith.addf %18, %24 : vector<2x16x128xf32>
    %c0_13 = arith.constant 0 : index
    %c1 = arith.constant 1 : index
    %c0_14 = arith.constant 0 : index
    %c0_15 = arith.constant 0 : index
    %26 = vector.load %arg2[%c0_13, %c1, %c0_14, %c0_15] : memref<2x4x16x128xf32, #tpu.memory_space<vmem>>, vector<2x1x16x128xf32>
    %27 = vector.shape_cast %26 : vector<2x1x16x128xf32> to vector<2x16x128xf32>
    %c0_16 = arith.constant 0 : index
    %c1_17 = arith.constant 1 : index
    %c0_18 = arith.constant 0 : index
    %c0_19 = arith.constant 0 : index
    %28 = vector.load %arg3[%c0_16, %c1_17, %c0_18, %c0_19] : memref<2x4x16x128xf32, #tpu.memory_space<vmem>>, vector<2x1x16x128xf32>
    %29 = vector.shape_cast %28 : vector<2x1x16x128xf32> to vector<2x16x128xf32>
    %30 = arith.subf %27, %29 : vector<2x16x128xf32>
    %31 = math.absf %30 : vector<2x16x128xf32>
    %32 = arith.addf %25, %31 : vector<2x16x128xf32>
    %c0_20 = arith.constant 0 : index
    %c2 = arith.constant 2 : index
    %c0_21 = arith.constant 0 : index
    %c0_22 = arith.constant 0 : index
    %33 = vector.load %arg2[%c0_20, %c2, %c0_21, %c0_22] : memref<2x4x16x128xf32, #tpu.memory_space<vmem>>, vector<2x1x16x128xf32>
    %34 = vector.shape_cast %33 : vector<2x1x16x128xf32> to vector<2x16x128xf32>
    %c0_23 = arith.constant 0 : index
    %c2_24 = arith.constant 2 : index
    %c0_25 = arith.constant 0 : index
    %c0_26 = arith.constant 0 : index
    %35 = vector.load %arg3[%c0_23, %c2_24, %c0_25, %c0_26] : memref<2x4x16x128xf32, #tpu.memory_space<vmem>>, vector<2x1x16x128xf32>
    %36 = vector.shape_cast %35 : vector<2x1x16x128xf32> to vector<2x16x128xf32>
    %37 = arith.subf %34, %36 : vector<2x16x128xf32>
    %38 = math.absf %37 : vector<2x16x128xf32>
    %39 = arith.addf %32, %38 : vector<2x16x128xf32>
    %c0_27 = arith.constant 0 : index
    %c3 = arith.constant 3 : index
    %c0_28 = arith.constant 0 : index
    %c0_29 = arith.constant 0 : index
    %40 = vector.load %arg2[%c0_27, %c3, %c0_28, %c0_29] : memref<2x4x16x128xf32, #tpu.memory_space<vmem>>, vector<2x1x16x128xf32>
    %41 = vector.shape_cast %40 : vector<2x1x16x128xf32> to vector<2x16x128xf32>
    %c0_30 = arith.constant 0 : index
    %c3_31 = arith.constant 3 : index
    %c0_32 = arith.constant 0 : index
    %c0_33 = arith.constant 0 : index
    %42 = vector.load %arg3[%c0_30, %c3_31, %c0_32, %c0_33] : memref<2x4x16x128xf32, #tpu.memory_space<vmem>>, vector<2x1x16x128xf32>
    %43 = vector.shape_cast %42 : vector<2x1x16x128xf32> to vector<2x16x128xf32>
    %44 = arith.subf %41, %43 : vector<2x16x128xf32>
    %45 = math.absf %44 : vector<2x16x128xf32>
    %46 = arith.addf %39, %45 : vector<2x16x128xf32>
    %cst_34 = arith.constant 0.000000e+00 : f32
    %47 = vector.broadcast %cst_34 : f32 to vector<2x16x128xf32>
    %48 = arith.select %17, %46, %47 : vector<2x16x128xi1>, vector<2x16x128xf32>
    %49 = arith.extui %17 : vector<2x16x128xi1> to vector<2x16x128xi32>
    %50 = arith.sitofp %49 : vector<2x16x128xi32> to vector<2x16x128xf32>
    %c0_35 = arith.constant 0 : index
    %c0_36 = arith.constant 0 : index
    %c0_37 = arith.constant 0 : index
    %51 = vector.load %arg4[%c0_35, %c0_36, %c0_37] : memref<1x32x128xf32, #tpu.memory_space<vmem>>, vector<1x32x128xf32>
    %52 = vector.shape_cast %51 : vector<1x32x128xf32> to vector<32x128xf32>
    %53 = vector.shape_cast %48 : vector<2x16x128xf32> to vector<1x32x128xf32>
    %cst_38 = arith.constant dense<0.000000e+00> : vector<32x128xf32>
    %54 = vector.multi_reduction <add>, %53, %cst_38 [0] : vector<1x32x128xf32> to vector<32x128xf32>
    %55 = arith.addf %52, %54 : vector<32x128xf32>
    %c0_39 = arith.constant 0 : index
    %c0_40 = arith.constant 0 : index
    %c0_41 = arith.constant 0 : index
    %56 = vector.load %arg4[%c0_39, %c0_40, %c0_41] : memref<1x32x128xf32, #tpu.memory_space<vmem>>, vector<1x32x128xf32>
    %57 = vector.shape_cast %56 : vector<1x32x128xf32> to vector<32x128xf32>
    %58 = vector.shape_cast %55 : vector<32x128xf32> to vector<1x32x128xf32>
    tpu.vector_store %arg4[%c0_39, %c0_40, %c0_41], %58 {strides = array<i32>} : memref<1x32x128xf32, #tpu.memory_space<vmem>>, vector<1x32x128xf32>,
    %c0_42 = arith.constant 0 : index
    %c0_43 = arith.constant 0 : index
    %c0_44 = arith.constant 0 : index
    %59 = vector.load %arg5[%c0_42, %c0_43, %c0_44] : memref<1x32x128xf32, #tpu.memory_space<vmem>>, vector<1x32x128xf32>
    %60 = vector.shape_cast %59 : vector<1x32x128xf32> to vector<32x128xf32>
    %61 = vector.shape_cast %50 : vector<2x16x128xf32> to vector<1x32x128xf32>
    %cst_45 = arith.constant dense<0.000000e+00> : vector<32x128xf32>
    %62 = vector.multi_reduction <add>, %61, %cst_45 [0] : vector<1x32x128xf32> to vector<32x128xf32>
    %63 = arith.addf %60, %62 : vector<32x128xf32>
    %c0_46 = arith.constant 0 : index
    %c0_47 = arith.constant 0 : index
    %c0_48 = arith.constant 0 : index
    %64 = vector.load %arg5[%c0_46, %c0_47, %c0_48] : memref<1x32x128xf32, #tpu.memory_space<vmem>>, vector<1x32x128xf32>
    %65 = vector.shape_cast %64 : vector<1x32x128xf32> to vector<32x128xf32>
    %66 = vector.shape_cast %63 : vector<32x128xf32> to vector<1x32x128xf32>
    tpu.vector_store %arg5[%c0_46, %c0_47, %c0_48], %66 {strides = array<i32>} : memref<1x32x128xf32, #tpu.memory_space<vmem>>, vector<1x32x128xf32>,
    return
  }
  func.func @transform_0(%arg0: i32, %arg1: i32) -> (i32, i32, i32, i32) {
    %c1_i32 = arith.constant 1 : i32
    %0 = arith.muli %arg0, %c1_i32 : i32
    %1 = arith.addi %0, %arg1 : i32
    %c0_i32 = arith.constant 0 : i32
    %2 = arith.minsi %1, %c0_i32 : i32
    %c0_i32_0 = arith.constant 0 : i32
    %c0_i32_1 = arith.constant 0 : i32
    %c0_i32_2 = arith.constant 0 : i32
    %c0_i32_3 = arith.constant 0 : i32
    return %c0_i32_0, %c0_i32_1, %2, %c0_i32_2 : i32, i32, i32, i32
  }
  func.func @transform_1(%arg0: i32, %arg1: i32) -> (i32, i32, i32, i32) {
    %c1_i32 = arith.constant 1 : i32
    %0 = arith.muli %arg0, %c1_i32 : i32
    %1 = arith.addi %0, %arg1 : i32
    %c0_i32 = arith.constant 0 : i32
    %2 = arith.minsi %1, %c0_i32 : i32
    %c0_i32_0 = arith.constant 0 : i32
    %c0_i32_1 = arith.constant 0 : i32
    %c0_i32_2 = arith.constant 0 : i32
    %c0_i32_3 = arith.constant 0 : i32
    return %c0_i32_0, %c0_i32_1, %2, %c0_i32_2 : i32, i32, i32, i32
  }
  func.func @transform_2(%arg0: i32, %arg1: i32) -> (i32, i32, i32) {
    %c0_i32 = arith.constant 0 : i32
    %c0_i32_0 = arith.constant 0 : i32
    %c0_i32_1 = arith.constant 0 : i32
    return %arg0, %c0_i32, %c0_i32_0 : i32, i32, i32
  }
  func.func @transform_3(%arg0: i32, %arg1: i32) -> (i32, i32, i32) {
    %c0_i32 = arith.constant 0 : i32
    %c0_i32_0 = arith.constant 0 : i32
    %c0_i32_1 = arith.constant 0 : i32
    return %arg0, %c0_i32, %c0_i32_0 : i32, i32, i32
  }
}

</mosaic_0001>

<llo_original>
// kernel: tpu_custom_call.1
$region0: #{tpu_custom_call.1}
  #allocation0 [shape = 'u32[]', space=smem, size = 0x4, offset = 0x4, fixed_abs, tag = 'smem constant byte address 0x4 - core index']
  #allocation1 [shape = 'u32[144,128]{1,0:T(1,128)}', space=vmem, size = 0x12000, scoped, tag = 'internal scratch']
  #allocation10 [shape = 's32[]', space=sflag, size = 0x4, offset = 0, fixed_abs, tag = 'sflag constant byte address 0x0 - dummy sync flag']
  #allocation12 [shape = 's32[]', space=sflag, size = 0x4, offset = 0, fixed_abs, tag = 'sflag constant byte address 0x0 - dummy sync flag']
  %s0 = inlined_call_operand.hbm [shape: f32[2,4,2,128], index: 0, kind: input, shape index: {}]
  %s1 = inlined_call_operand.hbm [shape: f32[2,4,2,128], index: 1, kind: input, shape index: {}]
  %s2 = inlined_call_operand.hbm [shape: f32[1,32,128], index: 2, kind: output, shape index: {0}]
  %s3 = inlined_call_operand.hbm [shape: f32[1,32,128], index: 3, kind: output, shape index: {1}]
  %4 = xla_tuple %s2, %s3
  %s5 = sld [smem:[#allocation0]]
  $region38: #{tpu_custom_call.1} parent=0
    _
  %s7 = ssub.s32 1, %s5
  %s8 = scalar_select 0, %s7, %s5
  $region1: #{tpu_custom_call.1} parent=0
    #allocation2 [shape = 'u8[65536]{0}', space=vmem, size = 0x10000, scoped, tag = 'input window, operand 0, single buffered']
    #allocation3 [shape = 's32[1]{0}', space=sflag, size = 0x4, scoped, tag = 'scoped memory for tpu_custom_call.1']
    #allocation4 [shape = 's32[1]{0}', space=sflag, size = 0x4, scoped, tag = 'scoped memory for tpu_custom_call.1']
    #allocation5 [shape = 'u8[65536]{0}', space=vmem, size = 0x10000, scoped, tag = 'input window, operand 1, single buffered']
    #allocation6 [shape = 's32[1]{0}', space=sflag, size = 0x4, scoped, tag = 'scoped memory for tpu_custom_call.1']
    #allocation7 [shape = 'u8[16384]{0}', space=vmem, size = 0x4000, scoped, tag = 'output window, operand 0, single buffered']
    #allocation8 [shape = 'u8[16384]{0}', space=vmem, size = 0x4000, scoped, tag = 'output window, operand 1, single buffered']
    #allocation9 [shape = 's32[1]{0}', space=sflag, size = 0x4, scoped, tag = 'scoped memory for tpu_custom_call.1']
    %9 = vsyncpa [#allocation3], 0
    %10 = vsyncpa [#allocation6], 0
    %11 = vsyncpa [#allocation4], 0
    %12 = vsyncpa [#allocation9], 0
    // Predicated region
    $region2: #{tpu_custom_call.1} parent=1 // pred_check
      _
    $region3: #{tpu_custom_call.1} parent=1 // pred_check_branch
      %14 = sbr.rel (0) target = $region5
    $region4: #{tpu_custom_call.1} parent=1 // pred_region
      #allocation11 [shape = 'u32[6]{0}', space=smem, size = 0x18, scoped, tag = 'DMA stride descriptor']
      %s15 = sadd.s32 0, 0
      %p16 = scmp.lt.s32.totalorder %s15, 0
      %s17 = scalar_select %p16, %s15, 0
      %s18 = smul.u32 8, %s17
      %s19 = ssub.s32 1, %s18
      %s20 = smul.u32 256, %s19
      %s22 = ssub.s32 2048, %s20
      %23 = vsyncadd [#allocation3], %s22
      %p24 = scmp.ne.s32.totalorder 0, %s20
      %s25 = smul.addr %s18, 32
      %s26 = scalar_lea.hbm %s0, %s25
      %s27 = smul.u32 2, %s19
      %s28 = smul.u32 %s27, 8
      %s30 = sshll.u32 1, 14
      %s31 = sxor.u32 4294967295, %s30
      %s33 = sld [smem:[#allocation0]]
      %s34 = sadd.s32 2, %s33
      %s36 = sshll.u32 7, 26
      %s37 = sxor.u32 4294967295, %s36
      %s38 = sand.u32 0, %s37
      %s39 = sshll.u32 %s34, 26
      %s40 = sor.u32 %s38, %s39
      %s41 = sshll.u32 [#allocation2], 4
      %s42 = int_to_ptr.vmem [resolvable:$true] %s41
      %s43 = sshll.u32 %s28, 4
      %48 = sst [smem:[#allocation11]] 32
      %s49 = scalar_lea.smem [#allocation11], 1
      %50 = sst [smem:[%s49]] 256
      %s51 = scalar_lea.smem [#allocation11], 2
      %52 = sst [smem:[%s51]] %s19
      %s53 = scalar_lea.smem [#allocation11], 3
      %54 = sst [smem:[%s53]] 32
      %s55 = scalar_lea.smem [#allocation11], 4
      %56 = sst [smem:[%s55]] 32
      %s57 = scalar_lea.smem [#allocation11], 5
      %58 = sst [smem:[%s57]] 2
      %60 = dma.general (%p24), %s26, %s43, %s42, [#allocation3], [#allocation10], [#allocation11], %s40, 0
    $region5: #{tpu_custom_call.1} parent=1 // pred_fallthru
      _
    // Predicated region
    $region6: #{tpu_custom_call.1} parent=1 // pred_check
      _
    $region7: #{tpu_custom_call.1} parent=1 // pred_check_branch
      %62 = sbr.rel (0) target = $region9
    $region8: #{tpu_custom_call.1} parent=1 // pred_region
      #allocation13 [shape = 'u32[6]{0}', space=smem, size = 0x18, scoped, tag = 'DMA stride descriptor']
      %s63 = sadd.s32 0, 0
      %p64 = scmp.lt.s32.totalorder %s63, 0
      %s65 = scalar_select %p64, %s63, 0
      %s66 = smul.u32 8, %s65
      %s67 = ssub.s32 1, %s66
      %s68 = smul.u32 256, %s67
      %s70 = ssub.s32 2048, %s68
      %71 = vsyncadd [#allocation6], %s70
      %p72 = scmp.ne.s32.totalorder 0, %s68
      %s73 = smul.addr %s66, 32
      %s74 = scalar_lea.hbm %s1, %s73
      %s75 = smul.u32 2, %s67
      %s76 = smul.u32 %s75, 8
      %s78 = sshll.u32 1, 14
      %s79 = sxor.u32 4294967295, %s78
      %s81 = sld [smem:[#allocation0]]
      %s82 = sadd.s32 2, %s81
      %s84 = sshll.u32 7, 26
      %s85 = sxor.u32 4294967295, %s84
      %s86 = sand.u32 0, %s85
      %s87 = sshll.u32 %s82, 26
      %s88 = sor.u32 %s86, %s87
      %s89 = sshll.u32 [#allocation5], 4
      %s90 = int_to_ptr.vmem [resolvable:$true] %s89
      %s91 = sshll.u32 %s76, 4
      %96 = sst [smem:[#allocation13]] 32
      %s97 = scalar_lea.smem [#allocation13], 1
      %98 = sst [smem:[%s97]] 256
      %s99 = scalar_lea.smem [#allocation13], 2
      %100 = sst [smem:[%s99]] %s67
      %s101 = scalar_lea.smem [#allocation13], 3
      %102 = sst [smem:[%s101]] 32
      %s103 = scalar_lea.smem [#allocation13], 4
      %104 = sst [smem:[%s103]] 32
      %s105 = scalar_lea.smem [#allocation13], 5
      %106 = sst [smem:[%s105]] 2
      %108 = dma.general (%p72), %s74, %s91, %s90, [#allocation6], [#allocation12], [#allocation13], %s88, 0
    $region9: #{tpu_custom_call.1} parent=1 // pred_fallthru
      _
    // Predicated region
    $region10: #{tpu_custom_call.1} parent=1 // pred_check
      _
    $region11: #{tpu_custom_call.1} parent=1 // pred_check_branch
      %110 = sbr.rel (0) target = $region13
    $region12: #{tpu_custom_call.1} parent=1 // pred_region
      %111 = dma.done [#allocation3], 2048
    $region13: #{tpu_custom_call.1} parent=1 // pred_fallthru
      _
    // Predicated region
    $region14: #{tpu_custom_call.1} parent=1 // pred_check
      _
    $region15: #{tpu_custom_call.1} parent=1 // pred_check_branch
      %113 = sbr.rel (0) target = $region17
    $region16: #{tpu_custom_call.1} parent=1 // pred_region
      %114 = dma.done [#allocation6], 2048
    $region17: #{tpu_custom_call.1} parent=1 // pred_fallthru
      _
    %s115 = sadd.s32 0, 0
    %p116 = scmp.lt.s32.totalorder %s115, 0
    %s117 = scalar_select %p116, %s115, 0
    %s118 = smul.u32 8, %s117
    %s119 = ssub.s32 1, %s118
    %s120 = smul.u32 256, %s119
    %s121 = sadd.s32 0, 0
    %p122 = scmp.lt.s32.totalorder %s121, 0
    %s123 = scalar_select %p122, %s121, 0
    %s124 = smul.u32 8, %s123
    %s125 = ssub.s32 1, %s124
    %s126 = smul.u32 256, %s125
    %p127 = scmp.eq.s32.totalorder 0, 0
    // Predicated region
    $region18: #{tpu_custom_call.1} parent=1 // pred_check
      %p128 = pneg %p127
    $region19: #{tpu_custom_call.1} parent=1 // pred_check_branch
      %130 = sbr.rel (%p128) target = $region21
    $region20: #{tpu_custom_call.1} parent=1 // pred_region
      %131 = vst [vmem:[#allocation7] sm:$0xff] 0.0
      %132 = vst [vmem:[#allocation7 + $0x8] sm:$0xff] 0.0
      %133 = vst [vmem:[#allocation7 + $0x10] sm:$0xff] 0.0
      %134 = vst [vmem:[#allocation7 + $0x18] sm:$0xff] 0.0
      %135 = vst [vmem:[#allocation8] sm:$0xff] 0.0
      %136 = vst [vmem:[#allocation8 + $0x8] sm:$0xff] 0.0
      %137 = vst [vmem:[#allocation8 + $0x10] sm:$0xff] 0.0
      %138 = vst [vmem:[#allocation8 + $0x18] sm:$0xff] 0.0
    $region21: #{tpu_custom_call.1} parent=1 // pred_fallthru
      _
    %s139 = sadd.s32 0, 0
    %s140 = smul.u32 %s139, 16
    %v141 = vlaneseq
    %v142 = vshrl.u32 %v141, 7
    %v143 = vadd.s32 %v142, 8
    %v144 = vstv %s140
    %v145 = vadd.s32 %v144, %v142
    %v146 = vadd.s32 %v144, %v143
    %vm147 = vcmp.lt.s32.totalorder %v145, 2
    %vm148 = vcmp.lt.s32.totalorder %v146, 2
    %v149 = vld [vmem:[#allocation5] sm:$0xff]
    %v150 = vld [vmem:[#allocation5 + $0x8] sm:$0xff]
    %v151 = vld [vmem:[#allocation5 + $0x40] sm:$0xff]
    %v152 = vld [vmem:[#allocation5 + $0x48] sm:$0xff]
    %vm153 = vcmp.ne.f32.partialorder %v149, 255.0
    %vm154 = vcmp.ne.f32.partialorder %v150, 255.0
    %vm155 = vcmp.ne.f32.partialorder %v151, 255.0
    %vm156 = vcmp.ne.f32.partialorder %v152, 255.0
    %v157 = vsel %vm147, 1, 0
    %v158 = vsel %vm148, 1, 0
    %vm159 = vcmp.eq.s32.totalorder %v157, 1
    %vm160 = vcmp.eq.s32.totalorder %v158, 1
    %vm161 = vmand %vm153, %vm159
    %vm162 = vmand %vm154, %vm160
    %vm163 = vmand %vm155, %vm159
    %vm164 = vmand %vm156, %vm160
    %v165 = vld [vmem:[#allocation2] sm:$0xff]
    %v166 = vld [vmem:[#allocation2 + $0x8] sm:$0xff]
    %v167 = vld [vmem:[#allocation2 + $0x40] sm:$0xff]
    %v168 = vld [vmem:[#allocation2 + $0x48] sm:$0xff]
    %v169 = vsub.f32 %v165, %v149
    %v170 = vsub.f32 %v166, %v150
    %v171 = vsub.f32 %v167, %v151
    %v172 = vsub.f32 %v168, %v152
    %v173 = vand.u32 2147483647, %v169
    %v174 = vand.u32 2147483647, %v170
    %v175 = vand.u32 2147483647, %v171
    %v176 = vand.u32 2147483647, %v172
    %v177 = vadd.f32 %v173, 0.0
    %v178 = vadd.f32 %v174, 0.0
    %v179 = vadd.f32 %v175, 0.0
    %v180 = vadd.f32 %v176, 0.0
    %s181 = scalar_lea.vmem [#allocation2], 16
    %v182 = vld [vmem:[%s181] sm:$0xff]
    %v183 = vld [vmem:[%s181 + $0x8] sm:$0xff]
    %v184 = vld [vmem:[%s181 + $0x40] sm:$0xff]
    %v185 = vld [vmem:[%s181 + $0x48] sm:$0xff]
    %s186 = scalar_lea.vmem [#allocation5], 16
    %v187 = vld [vmem:[%s186] sm:$0xff]
    %v188 = vld [vmem:[%s186 + $0x8] sm:$0xff]
    %v189 = vld [vmem:[%s186 + $0x40] sm:$0xff]
    %v190 = vld [vmem:[%s186 + $0x48] sm:$0xff]
    %v191 = vsub.f32 %v182, %v187
    %v192 = vsub.f32 %v183, %v188
    %v193 = vsub.f32 %v184, %v189
    %v194 = vsub.f32 %v185, %v190
    %v195 = vand.u32 2147483647, %v191
    %v196 = vand.u32 2147483647, %v192
    %v197 = vand.u32 2147483647, %v193
    %v198 = vand.u32 2147483647, %v194
    %v199 = vadd.f32 %v177, %v195
    %v200 = vadd.f32 %v178, %v196
    %v201 = vadd.f32 %v179, %v197
    %v202 = vadd.f32 %v180, %v198
    %s203 = scalar_lea.vmem [#allocation2], 32
    %v204 = vld [vmem:[%s203] sm:$0xff]
    %v205 = vld [vmem:[%s203 + $0x8] sm:$0xff]
    %v206 = vld [vmem:[%s203 + $0x40] sm:$0xff]
    %v207 = vld [vmem:[%s203 + $0x48] sm:$0xff]
    %s208 = scalar_lea.vmem [#allocation5], 32
    %v209 = vld [vmem:[%s208] sm:$0xff]
    %v210 = vld [vmem:[%s208 + $0x8] sm:$0xff]
    %v211 = vld [vmem:[%s208 + $0x40] sm:$0xff]
    %v212 = vld [vmem:[%s208 + $0x48] sm:$0xff]
    %v213 = vsub.f32 %v204, %v209
    %v214 = vsub.f32 %v205, %v210
    %v215 = vsub.f32 %v206, %v211
    %v216 = vsub.f32 %v207, %v212
    %v217 = vand.u32 2147483647, %v213
    %v218 = vand.u32 2147483647, %v214
    %v219 = vand.u32 2147483647, %v215
    %v220 = vand.u32 2147483647, %v216
    %v221 = vadd.f32 %v199, %v217
    %v222 = vadd.f32 %v200, %v218
    %v223 = vadd.f32 %v201, %v219
    %v224 = vadd.f32 %v202, %v220
    %s225 = scalar_lea.vmem [#allocation2], 48
    %v226 = vld [vmem:[%s225] sm:$0xff]
    %v227 = vld [vmem:[%s225 + $0x8] sm:$0xff]
    %v228 = vld [vmem:[%s225 + $0x40] sm:$0xff]
    %v229 = vld [vmem:[%s225 + $0x48] sm:$0xff]
    %s230 = scalar_lea.vmem [#allocation5], 48
    %v231 = vld [vmem:[%s230] sm:$0xff]
    %v232 = vld [vmem:[%s230 + $0x8] sm:$0xff]
    %v233 = vld [vmem:[%s230 + $0x40] sm:$0xff]
    %v234 = vld [vmem:[%s230 + $0x48] sm:$0xff]
    %v235 = vsub.f32 %v226, %v231
    %v236 = vsub.f32 %v227, %v232
    %v237 = vsub.f32 %v228, %v233
    %v238 = vsub.f32 %v229, %v234
    %v239 = vand.u32 2147483647, %v235
    %v240 = vand.u32 2147483647, %v236
    %v241 = vand.u32 2147483647, %v237
    %v242 = vand.u32 2147483647, %v238
    %v243 = vadd.f32 %v221, %v239
    %v244 = vadd.f32 %v222, %v240
    %v245 = vadd.f32 %v223, %v241
    %v246 = vadd.f32 %v224, %v242
    %v247 = vsel %vm161, %v243, 0.0
    %v248 = vsel %vm162, %v244, 0.0
    %v249 = vsel %vm163, %v245, 0.0
    %v250 = vsel %vm164, %v246, 0.0
    %v251 = vsel %vm161, 1, 0
    %v252 = vsel %vm162, 1, 0
    %v253 = vsel %vm163, 1, 0
    %v254 = vsel %vm164, 1, 0
    %v255 = vcvt.s32.f32 %v251
    %v256 = vcvt.s32.f32 %v252
    %v257 = vcvt.s32.f32 %v253
    %v258 = vcvt.s32.f32 %v254
    %v259 = vld [vmem:[#allocation7] sm:$0xff]
    %v260 = vld [vmem:[#allocation7 + $0x8] sm:$0xff]
    %v261 = vld [vmem:[#allocation7 + $0x10] sm:$0xff]
    %v262 = vld [vmem:[#allocation7 + $0x18] sm:$0xff]
    %v263 = vadd.f32 %v247, 0.0
    %v264 = vadd.f32 %v248, 0.0
    %v265 = vadd.f32 %v249, 0.0
    %v266 = vadd.f32 %v250, 0.0
    %v267 = vadd.f32 %v259, %v263
    %v268 = vadd.f32 %v260, %v264
    %v269 = vadd.f32 %v261, %v265
    %v270 = vadd.f32 %v262, %v266
    %271 = vst [vmem:[#allocation7] sm:$0xff] %v267
    %272 = vst [vmem:[#allocation7 + $0x8] sm:$0xff] %v268
    %273 = vst [vmem:[#allocation7 + $0x10] sm:$0xff] %v269
    %274 = vst [vmem:[#allocation7 + $0x18] sm:$0xff] %v270
    %v275 = vld [vmem:[#allocation8] sm:$0xff]
    %v276 = vld [vmem:[#allocation8 + $0x8] sm:$0xff]
    %v277 = vld [vmem:[#allocation8 + $0x10] sm:$0xff]
    %v278 = vld [vmem:[#allocation8 + $0x18] sm:$0xff]
    %v279 = vadd.f32 %v255, 0.0
    %v280 = vadd.f32 %v256, 0.0
    %v281 = vadd.f32 %v257, 0.0
    %v282 = vadd.f32 %v258, 0.0
    %v283 = vadd.f32 %v275, %v279
    %v284 = vadd.f32 %v276, %v280
    %v285 = vadd.f32 %v277, %v281
    %v286 = vadd.f32 %v278, %v282
    %287 = vst [vmem:[#allocation8] sm:$0xff] %v283
    %288 = vst [vmem:[#allocation8 + $0x8] sm:$0xff] %v284
    %289 = vst [vmem:[#allocation8 + $0x10] sm:$0xff] %v285
    %290 = vst [vmem:[#allocation8 + $0x18] sm:$0xff] %v286
    // Predicated region
    $region22: #{tpu_custom_call.1} parent=1 // pred_check
      _
    $region23: #{tpu_custom_call.1} parent=1 // pred_check_branch
      %292 = sbr.rel (0) target = $region25
    $region24: #{tpu_custom_call.1} parent=1 // pred_region
      %s294 = ssub.s32 512, 512
      %295 = vsyncadd [#allocation4], %s294
      %s296 = sshll.u32 [#allocation7], 4
      %s297 = int_to_ptr.vmem [resolvable:$true] %s296
      %302 = dma.vmem_to_hbm [thread:$0]  %s297, 512, %s2, [#allocation4], 128, 128, 8
    $region25: #{tpu_custom_call.1} parent=1 // pred_fallthru
      _
    // Predicated region
    $region26: #{tpu_custom_call.1} parent=1 // pred_check
      _
    $region27: #{tpu_custom_call.1} parent=1 // pred_check_branch
      %304 = sbr.rel (0) target = $region29
    $region28: #{tpu_custom_call.1} parent=1 // pred_region
      %s306 = ssub.s32 512, 512
      %307 = vsyncadd [#allocation9], %s306
      %s308 = sshll.u32 [#allocation8], 4
      %s309 = int_to_ptr.vmem [resolvable:$true] %s308
      %314 = dma.vmem_to_hbm [thread:$0]  %s309, 512, %s3, [#allocation9], 128, 128, 8
    $region29: #{tpu_custom_call.1} parent=1 // pred_fallthru
      _
    // Predicated region
    $region30: #{tpu_custom_call.1} parent=1 // pred_check
      _
    $region31: #{tpu_custom_call.1} parent=1 // pred_check_branch
      %316 = sbr.rel (0) target = $region33
    $region32: #{tpu_custom_call.1} parent=1 // pred_region
      %317 = dma.done [#allocation4], 512
    $region33: #{tpu_custom_call.1} parent=1 // pred_fallthru
      _
    // Predicated region
    $region34: #{tpu_custom_call.1} parent=1 // pred_check
      _
    $region35: #{tpu_custom_call.1} parent=1 // pred_check_branch
      %319 = sbr.rel (0) target = $region37
    $region36: #{tpu_custom_call.1} parent=1 // pred_region
      %320 = dma.done [#allocation9], 512
    $region37: #{tpu_custom_call.1} parent=1 // pred_fallthru
      _
    %321 = vsyncpa [#allocation3], 1
    %322 = vsyncpa [#allocation6], 1
    %323 = vsyncpa [#allocation4], 1
    %324 = vsyncpa [#allocation9], 1

</llo_original>
